<compile_context>
chip_gen: v7x
topology: tpu7x:2x2x1
jax: 0.10.0
libtpu: 0.0.40
codegen_flags: <defaults>
</compile_context>

<pallas_src>
import jax
import jax.numpy as jnp
from jax.experimental import pallas as pl
from jax.experimental.pallas import tpu as pltpu


# ----------------------------- Pallas kernel -------------------------------
def _make_jsd_kernel(M):
    """Kernel over one batch tile: refs = (x_0..x_{M-1}, cross_out, ent_out).

    x_m      : (TN, C) VMEM tile of modality-m logits (native dtype).
    cross_out: (M, M) f32 SMEM — accumulates sum((p_m+p_n)*log((p_m+p_n)/2))
               for m < n only (diag / lower triangle stay 0).
    ent_out  : (M, 1) f32 SMEM — accumulates sum(p_m * log p_m).
    """

    def kernel(*refs):
        x_refs = refs[:M]
        cross_ref = refs[M]
        ent_ref = refs[M + 1]

        @pl.when(pl.program_id(0) == 0)
        def _init():
            for m in range(M):
                ent_ref[m, 0] = jnp.float32(0.0)
                for n in range(M):
                    cross_ref[m, n] = jnp.float32(0.0)

        # per-modality softmax (f32 compute) + entropy-sum accumulation
        probs = []
        for m in range(M):
            x = x_refs[m][...].astype(jnp.float32)            # (TN, C)
            x_max = jnp.max(x, axis=-1, keepdims=True)
            z = x - x_max
            e = jnp.exp(z)
            se = jnp.sum(e, axis=-1, keepdims=True)
            p = e / se
            logp = z - jnp.log(se)
            ent_ref[m, 0] = ent_ref[m, 0] + jnp.sum(p * logp)
            probs.append(p)

        # upper-triangular pairs only: one (TN, C) log per pair
        for m in range(M):
            for n in range(m + 1, M):
                s = probs[m] + probs[n]
                cross_ref[m, n] = cross_ref[m, n] + jnp.sum(s * jnp.log(s * 0.5))

    return kernel


def _pick_tile_n(N, C, M, vmem_budget=8 * 1024 * 1024):
    """Largest batch-tile TN that divides N, is a multiple of 8 (or == N) and
    keeps the per-step working set well inside the default scoped VMEM."""
    if N % 8 != 0:
        return N                                   # whole-array block fallback
    per_row = 6 * M * C * 4                        # ~live f32 bytes per batch row
    tn_cap = max(8, (vmem_budget // per_row) // 8 * 8)
    tn = min(N, tn_cap)
    tn -= tn % 8
    tn = max(tn, 8)
    while N % tn != 0:
        tn -= 8
    return tn


def jsd_matrix(xs_list, tile_n=None):
    """xs_list: list of M arrays (N, C) of logits -> (M, M) pairwise JS matrix
    matching (F.kl_div(log_mid, p, 'mean') + F.kl_div(log_mid, q, 'mean')) / 2,
    with an exact 0.0 on the diagonal."""
    M = len(xs_list)
    N, C = xs_list[0].shape
    TN = tile_n if tile_n is not None else _pick_tile_n(N, C, M)
    assert N % TN == 0, "tile_n must divide the batch dimension"

    cross, ent = pl.pallas_call(
        _make_jsd_kernel(M),
        out_shape=(jax.ShapeDtypeStruct((M, M), jnp.float32),
                   jax.ShapeDtypeStruct((M, 1), jnp.float32)),
        grid_spec=pltpu.PrefetchScalarGridSpec(
            num_scalar_prefetch=0,
            grid=(N // TN,),
            in_specs=[pl.BlockSpec((TN, C), lambda i: (i, 0)) for _ in range(M)],
            out_specs=(pl.BlockSpec(memory_space=pltpu.MemorySpace.SMEM),
                       pl.BlockSpec(memory_space=pltpu.MemorySpace.SMEM)),
        ),
        compiler_params=pltpu.CompilerParams(
            dimension_semantics=("arbitrary",),   # reduction over batch tiles
        ),
    )(*xs_list)

    # TODO(synk): on v7x a leading 'parallel' grid axis (2 TCs) with per-core
    # partial outputs would roughly double throughput; omitted for simplicity.

    # tiny (M, M) assembly in plain JAX:
    #   kl_sum(m,n) = E_m + E_n - S_mn ;  js = 0.5 * kl_sum / (N*C) ; diag = 0
    e = ent[:, 0]
    cross_full = cross + cross.T
    inv_numel = jnp.float32(1.0 / (N * C))
    js = 0.5 * (e[:, None] + e[None, :] - cross_full) * inv_numel
    js = jnp.where(jnp.eye(M, dtype=bool), jnp.float32(0.0), js)
    return js


# ------------------------- scalar regularizer (glue) -----------------------
def _regularizer_jax(loss1, loss2, beta=2.0, threshold=1e-5, method="exp"):
    d = loss1 - loss2
    gate = d > threshold
    if method in ("exp", "multiply"):
        return jnp.where(gate, beta * jnp.exp(d) - 1.0, 0.0)
    if method == "switch":
        return jnp.where(gate, d * jax.nn.sigmoid(beta * d), 0.0)
    if method == "identity":
        return jnp.where(gate, beta * d, 0.0)
    if method == "exp_in":
        return jnp.where(gate, jnp.exp(beta * d) - 1.0, 0.0)
    if method == "bi_exp":
        return beta * jnp.exp(d) - 1.0
    if method == "bi_switch":
        return d * jax.nn.sigmoid(beta * d)
    if method == "bi_exp_in":
        return jnp.where(gate, 2.0 * jnp.exp(beta * d) - 1.0, 0.0)
    if method == "bibi_exp_in":
        return 2.0 * jnp.exp(beta * d) - 1.0
    if method == "log":
        return jnp.where(gate, jnp.log(beta * d + 1.0), 0.0)
    raise ValueError(f"unknown reg method {method}")


# ------------------------------- module port -------------------------------
class JSSSALoss:
    def __init__(self, requirments, beta=2.0, lamda=0.1, threshold=1e-5,
                 reg_method="exp"):
        self.requirments = list(requirments)
        self.beta = beta
        self.lamda = lamda
        self.threshold = threshold
        self.reg_method = reg_method

    def __call__(self, dict_loss, dict_x):
        reqs = self.requirments
        # native-dtype inputs go straight to the kernel (cast to f32 per tile)
        js = jsd_matrix([dict_x[r] for r in reqs])              # (M, M)

        dict_jsdiv = {}
        for mi, m in enumerate(reqs):
            acc = jnp.float32(0.0)
            for ni, n in enumerate(reqs):
                focal = _regularizer_jax(dict_loss[m], dict_loss[n],
                                         self.beta, self.threshold,
                                         self.reg_method)
                acc = acc + focal * js[mi, ni]
            dict_jsdiv[m] = acc

        total_loss = {"ssaloss": dict_jsdiv, "total_loss": {}}
        for r in reqs:
            total_loss["total_loss"][r] = dict_loss[r] + self.lamda * dict_jsdiv[r]
        return total_loss


# ------------------------------ reference (jnp) -----------------------------
def _ref_js(p, q):
    log_mid = jnp.log((p + q) / 2.0)
    klp = jnp.mean(p * (jnp.log(p) - log_mid))
    klq = jnp.mean(q * (jnp.log(q) - log_mid))
    return (klp + klq) / 2.0


if __name__ == "__main__":
    key = jax.random.PRNGKey(0)
    reqs = ["rgb", "depth", "flow"]
    M, N, C = len(reqs), 16, 32

    k_x, _ = jax.random.split(key)
    xs = jax.random.normal(k_x, (M, N, C), dtype=jnp.float32)
    losses = jnp.array([1.30, 0.70, 0.95], dtype=jnp.float32)  # per-modality CE losses

    dict_x = {r: xs[i] for i, r in enumerate(reqs)}
    dict_loss = {r: losses[i] for i, r in enumerate(reqs)}

    head = JSSSALoss(reqs, beta=2.0, lamda=0.1, threshold=1e-5, reg_method="exp")
    out = head(dict_loss, dict_x)
    out = jax.tree_util.tree_map(jax.block_until_ready, out)

    # correctness check: Pallas JS matrix (multi-tile grid) vs. plain JAX
    js_kernel = jax.block_until_ready(
        jsd_matrix([dict_x[r] for r in reqs], tile_n=8))        # grid of 2 tiles
    probs = jax.nn.softmax(xs, axis=-1)
    js_ref = jnp.array([[_ref_js(probs[m], probs[n]) for n in range(M)]
                        for m in range(M)], dtype=jnp.float32)
    assert jnp.allclose(js_kernel, js_ref, atol=1e-5, rtol=1e-4), (js_kernel, js_ref)

    # sanity: total_loss[r] == loss[r] + lamda * ssaloss[r]
    for r in reqs:
        expected = dict_loss[r] + 0.1 * out["ssaloss"][r]
        assert jnp.allclose(out["total_loss"][r], expected, atol=1e-6)

    print("KERNEL_OK")
</pallas_src>

<mosaic_0001>
module attributes {stable_mosaic.version = 11 : i64} {
  func.func @kernel(%arg0: i32, %arg1: memref<16x32xf32, #tpu.memory_space<vmem>>, %arg2: memref<16x32xf32, #tpu.memory_space<vmem>>, %arg3: memref<16x32xf32, #tpu.memory_space<vmem>>, %arg4: memref<3x3xf32, #tpu.memory_space<smem>>, %arg5: memref<3x1xf32, #tpu.memory_space<smem>>) attributes {dimension_semantics = [#tpu.dimension_semantics<arbitrary>], iteration_bounds = array<i64: 1>, scalar_prefetch = 0 : i64, scratch_operands = 0 : i64, tpu.core_type = #tpu.core_type<tc>, window_params = [{transform_indices = @transform_0, window_bounds = array<i64: 16, 32>}, {transform_indices = @transform_1, window_bounds = array<i64: 16, 32>}, {transform_indices = @transform_2, window_bounds = array<i64: 16, 32>}, {transform_indices = @transform_3, window_bounds = array<i64: 3, 3>}, {transform_indices = @transform_4, window_bounds = array<i64: 3, 1>}]} {
    %c0_i32 = arith.constant 0 : i32
    %0 = arith.cmpi eq, %arg0, %c0_i32 : i32
    %1 = arith.extui %0 : i1 to i32
    %c0_i32_0 = arith.constant 0 : i32
    %2 = arith.cmpi ne, %1, %c0_i32_0 : i32
    scf.if %2 {
      %cst_42 = arith.constant 0.000000e+00 : f32
      %c0_43 = arith.constant 0 : index
      %c0_44 = arith.constant 0 : index
      %102 = memref.load %arg5[%c0_43, %c0_44] : memref<3x1xf32, #tpu.memory_space<smem>>
      memref.store %cst_42, %arg5[%c0_43, %c0_44] : memref<3x1xf32, #tpu.memory_space<smem>>
      %cst_45 = arith.constant 0.000000e+00 : f32
      %c0_46 = arith.constant 0 : index
      %c0_47 = arith.constant 0 : index
      %103 = memref.load %arg4[%c0_46, %c0_47] : memref<3x3xf32, #tpu.memory_space<smem>>
      memref.store %cst_45, %arg4[%c0_46, %c0_47] : memref<3x3xf32, #tpu.memory_space<smem>>
      %cst_48 = arith.constant 0.000000e+00 : f32
      %c0_49 = arith.constant 0 : index
      %c1_50 = arith.constant 1 : index
      %104 = memref.load %arg4[%c0_49, %c1_50] : memref<3x3xf32, #tpu.memory_space<smem>>
      memref.store %cst_48, %arg4[%c0_49, %c1_50] : memref<3x3xf32, #tpu.memory_space<smem>>
      %cst_51 = arith.constant 0.000000e+00 : f32
      %c0_52 = arith.constant 0 : index
      %c2_53 = arith.constant 2 : index
      %105 = memref.load %arg4[%c0_52, %c2_53] : memref<3x3xf32, #tpu.memory_space<smem>>
      memref.store %cst_51, %arg4[%c0_52, %c2_53] : memref<3x3xf32, #tpu.memory_space<smem>>
      %cst_54 = arith.constant 0.000000e+00 : f32
      %c1_55 = arith.constant 1 : index
      %c0_56 = arith.constant 0 : index
      %106 = memref.load %arg5[%c1_55, %c0_56] : memref<3x1xf32, #tpu.memory_space<smem>>
      memref.store %cst_54, %arg5[%c1_55, %c0_56] : memref<3x1xf32, #tpu.memory_space<smem>>
      %cst_57 = arith.constant 0.000000e+00 : f32
      %c1_58 = arith.constant 1 : index
      %c0_59 = arith.constant 0 : index
      %107 = memref.load %arg4[%c1_58, %c0_59] : memref<3x3xf32, #tpu.memory_space<smem>>
      memref.store %cst_57, %arg4[%c1_58, %c0_59] : memref<3x3xf32, #tpu.memory_space<smem>>
      %cst_60 = arith.constant 0.000000e+00 : f32
      %c1_61 = arith.constant 1 : index
      %c1_62 = arith.constant 1 : index
      %108 = memref.load %arg4[%c1_61, %c1_62] : memref<3x3xf32, #tpu.memory_space<smem>>
      memref.store %cst_60, %arg4[%c1_61, %c1_62] : memref<3x3xf32, #tpu.memory_space<smem>>
      %cst_63 = arith.constant 0.000000e+00 : f32
      %c1_64 = arith.constant 1 : index
      %c2_65 = arith.constant 2 : index
      %109 = memref.load %arg4[%c1_64, %c2_65] : memref<3x3xf32, #tpu.memory_space<smem>>
      memref.store %cst_63, %arg4[%c1_64, %c2_65] : memref<3x3xf32, #tpu.memory_space<smem>>
      %cst_66 = arith.constant 0.000000e+00 : f32
      %c2_67 = arith.constant 2 : index
      %c0_68 = arith.constant 0 : index
      %110 = memref.load %arg5[%c2_67, %c0_68] : memref<3x1xf32, #tpu.memory_space<smem>>
      memref.store %cst_66, %arg5[%c2_67, %c0_68] : memref<3x1xf32, #tpu.memory_space<smem>>
      %cst_69 = arith.constant 0.000000e+00 : f32
      %c2_70 = arith.constant 2 : index
      %c0_71 = arith.constant 0 : index
      %111 = memref.load %arg4[%c2_70, %c0_71] : memref<3x3xf32, #tpu.memory_space<smem>>
      memref.store %cst_69, %arg4[%c2_70, %c0_71] : memref<3x3xf32, #tpu.memory_space<smem>>
      %cst_72 = arith.constant 0.000000e+00 : f32
      %c2_73 = arith.constant 2 : index
      %c1_74 = arith.constant 1 : index
      %112 = memref.load %arg4[%c2_73, %c1_74] : memref<3x3xf32, #tpu.memory_space<smem>>
      memref.store %cst_72, %arg4[%c2_73, %c1_74] : memref<3x3xf32, #tpu.memory_space<smem>>
      %cst_75 = arith.constant 0.000000e+00 : f32
      %c2_76 = arith.constant 2 : index
      %c2_77 = arith.constant 2 : index
      %113 = memref.load %arg4[%c2_76, %c2_77] : memref<3x3xf32, #tpu.memory_space<smem>>
      memref.store %cst_75, %arg4[%c2_76, %c2_77] : memref<3x3xf32, #tpu.memory_space<smem>>
    } else {
    }
    %c0 = arith.constant 0 : index
    %c0_1 = arith.constant 0 : index
    %3 = vector.load %arg1[%c0, %c0_1] : memref<16x32xf32, #tpu.memory_space<vmem>>, vector<16x32xf32>
    %cst = arith.constant dense<0xFF800000> : vector<16xf32>
    %4 = vector.multi_reduction <maximumf>, %3, %cst [1] : vector<16x32xf32> to vector<16xf32>
    %5 = vector.shape_cast %4 : vector<16xf32> to vector<16x1xf32>
    %6 = vector.broadcast %5 : vector<16x1xf32> to vector<16x32xf32>
    %7 = arith.subf %3, %6 : vector<16x32xf32>
    %8 = math.exp %7 : vector<16x32xf32>
    %cst_2 = arith.constant dense<0.000000e+00> : vector<16xf32>
    %9 = vector.multi_reduction <add>, %8, %cst_2 [1] : vector<16x32xf32> to vector<16xf32>
    %10 = vector.shape_cast %9 : vector<16xf32> to vector<16x1xf32>
    %11 = vector.broadcast %10 : vector<16x1xf32> to vector<16x32xf32>
    %12 = arith.divf %8, %11 : vector<16x32xf32>
    %13 = math.log %10 : vector<16x1xf32>
    %14 = vector.broadcast %13 : vector<16x1xf32> to vector<16x32xf32>
    %15 = arith.subf %7, %14 : vector<16x32xf32>
    %c0_3 = arith.constant 0 : index
    %c0_4 = arith.constant 0 : index
    %16 = memref.load %arg5[%c0_3, %c0_4] : memref<3x1xf32, #tpu.memory_space<smem>>
    %17 = arith.mulf %12, %15 : vector<16x32xf32>
    %18 = vector.shape_cast %17 : vector<16x32xf32> to vector<1x16x32xf32>
    %cst_5 = arith.constant dense<0.000000e+00> : vector<1xf32>
    %19 = vector.multi_reduction <add>, %18, %cst_5 [1, 2] : vector<1x16x32xf32> to vector<1xf32>
    %20 = vector.shape_cast %19 : vector<1xf32> to vector<1x1x1xf32>
    %21 = vector.extract %20[0, 0, 0] : f32 from vector<1x1x1xf32>
    %22 = arith.addf %16, %21 : f32
    %c0_6 = arith.constant 0 : index
    %c0_7 = arith.constant 0 : index
    %23 = memref.load %arg5[%c0_6, %c0_7] : memref<3x1xf32, #tpu.memory_space<smem>>
    memref.store %22, %arg5[%c0_6, %c0_7] : memref<3x1xf32, #tpu.memory_space<smem>>
    %c0_8 = arith.constant 0 : index
    %c0_9 = arith.constant 0 : index
    %24 = vector.load %arg2[%c0_8, %c0_9] : memref<16x32xf32, #tpu.memory_space<vmem>>, vector<16x32xf32>
    %cst_10 = arith.constant dense<0xFF800000> : vector<16xf32>
    %25 = vector.multi_reduction <maximumf>, %24, %cst_10 [1] : vector<16x32xf32> to vector<16xf32>
    %26 = vector.shape_cast %25 : vector<16xf32> to vector<16x1xf32>
    %27 = vector.broadcast %26 : vector<16x1xf32> to vector<16x32xf32>
    %28 = arith.subf %24, %27 : vector<16x32xf32>
    %29 = math.exp %28 : vector<16x32xf32>
    %cst_11 = arith.constant dense<0.000000e+00> : vector<16xf32>
    %30 = vector.multi_reduction <add>, %29, %cst_11 [1] : vector<16x32xf32> to vector<16xf32>
    %31 = vector.shape_cast %30 : vector<16xf32> to vector<16x1xf32>
    %32 = vector.broadcast %31 : vector<16x1xf32> to vector<16x32xf32>
    %33 = arith.divf %29, %32 : vector<16x32xf32>
    %34 = math.log %31 : vector<16x1xf32>
    %35 = vector.broadcast %34 : vector<16x1xf32> to vector<16x32xf32>
    %36 = arith.subf %28, %35 : vector<16x32xf32>
    %c1 = arith.constant 1 : index
    %c0_12 = arith.constant 0 : index
    %37 = memref.load %arg5[%c1, %c0_12] : memref<3x1xf32, #tpu.memory_space<smem>>
    %38 = arith.mulf %33, %36 : vector<16x32xf32>
    %39 = vector.shape_cast %38 : vector<16x32xf32> to vector<1x16x32xf32>
    %cst_13 = arith.constant dense<0.000000e+00> : vector<1xf32>
    %40 = vector.multi_reduction <add>, %39, %cst_13 [1, 2] : vector<1x16x32xf32> to vector<1xf32>
    %41 = vector.shape_cast %40 : vector<1xf32> to vector<1x1x1xf32>
    %42 = vector.extract %41[0, 0, 0] : f32 from vector<1x1x1xf32>
    %43 = arith.addf %37, %42 : f32
    %c1_14 = arith.constant 1 : index
    %c0_15 = arith.constant 0 : index
    %44 = memref.load %arg5[%c1_14, %c0_15] : memref<3x1xf32, #tpu.memory_space<smem>>
    memref.store %43, %arg5[%c1_14, %c0_15] : memref<3x1xf32, #tpu.memory_space<smem>>
    %c0_16 = arith.constant 0 : index
    %c0_17 = arith.constant 0 : index
    %45 = vector.load %arg3[%c0_16, %c0_17] : memref<16x32xf32, #tpu.memory_space<vmem>>, vector<16x32xf32>
    %cst_18 = arith.constant dense<0xFF800000> : vector<16xf32>
    %46 = vector.multi_reduction <maximumf>, %45, %cst_18 [1] : vector<16x32xf32> to vector<16xf32>
    %47 = vector.shape_cast %46 : vector<16xf32> to vector<16x1xf32>
    %48 = vector.broadcast %47 : vector<16x1xf32> to vector<16x32xf32>
    %49 = arith.subf %45, %48 : vector<16x32xf32>
    %50 = math.exp %49 : vector<16x32xf32>
    %cst_19 = arith.constant dense<0.000000e+00> : vector<16xf32>
    %51 = vector.multi_reduction <add>, %50, %cst_19 [1] : vector<16x32xf32> to vector<16xf32>
    %52 = vector.shape_cast %51 : vector<16xf32> to vector<16x1xf32>
    %53 = vector.broadcast %52 : vector<16x1xf32> to vector<16x32xf32>
    %54 = arith.divf %50, %53 : vector<16x32xf32>
    %55 = math.log %52 : vector<16x1xf32>
    %56 = vector.broadcast %55 : vector<16x1xf32> to vector<16x32xf32>
    %57 = arith.subf %49, %56 : vector<16x32xf32>
    %c2 = arith.constant 2 : index
    %c0_20 = arith.constant 0 : index
    %58 = memref.load %arg5[%c2, %c0_20] : memref<3x1xf32, #tpu.memory_space<smem>>
    %59 = arith.mulf %54, %57 : vector<16x32xf32>
    %60 = vector.shape_cast %59 : vector<16x32xf32> to vector<1x16x32xf32>
    %cst_21 = arith.constant dense<0.000000e+00> : vector<1xf32>
    %61 = vector.multi_reduction <add>, %60, %cst_21 [1, 2] : vector<1x16x32xf32> to vector<1xf32>
    %62 = vector.shape_cast %61 : vector<1xf32> to vector<1x1x1xf32>
    %63 = vector.extract %62[0, 0, 0] : f32 from vector<1x1x1xf32>
    %64 = arith.addf %58, %63 : f32
    %c2_22 = arith.constant 2 : index
    %c0_23 = arith.constant 0 : index
    %65 = memref.load %arg5[%c2_22, %c0_23] : memref<3x1xf32, #tpu.memory_space<smem>>
    memref.store %64, %arg5[%c2_22, %c0_23] : memref<3x1xf32, #tpu.memory_space<smem>>
    %66 = arith.addf %12, %33 : vector<16x32xf32>
    %c0_24 = arith.constant 0 : index
    %c1_25 = arith.constant 1 : index
    %67 = memref.load %arg4[%c0_24, %c1_25] : memref<3x3xf32, #tpu.memory_space<smem>>
    %cst_26 = arith.constant 5.000000e-01 : f32
    %68 = vector.broadcast %cst_26 : f32 to vector<16x32xf32>
    %69 = arith.mulf %66, %68 : vector<16x32xf32>
    %70 = math.log %69 : vector<16x32xf32>
    %71 = arith.mulf %66, %70 : vector<16x32xf32>
    %72 = vector.shape_cast %71 : vector<16x32xf32> to vector<1x16x32xf32>
    %cst_27 = arith.constant dense<0.000000e+00> : vector<1xf32>
    %73 = vector.multi_reduction <add>, %72, %cst_27 [1, 2] : vector<1x16x32xf32> to vector<1xf32>
    %74 = vector.shape_cast %73 : vector<1xf32> to vector<1x1x1xf32>
    %75 = vector.extract %74[0, 0, 0] : f32 from vector<1x1x1xf32>
    %76 = arith.addf %67, %75 : f32
    %c0_28 = arith.constant 0 : index
    %c1_29 = arith.constant 1 : index
    %77 = memref.load %arg4[%c0_28, %c1_29] : memref<3x3xf32, #tpu.memory_space<smem>>
    memref.store %76, %arg4[%c0_28, %c1_29] : memref<3x3xf32, #tpu.memory_space<smem>>
    %78 = arith.addf %12, %54 : vector<16x32xf32>
    %c0_30 = arith.constant 0 : index
    %c2_31 = arith.constant 2 : index
    %79 = memref.load %arg4[%c0_30, %c2_31] : memref<3x3xf32, #tpu.memory_space<smem>>
    %cst_32 = arith.constant 5.000000e-01 : f32
    %80 = vector.broadcast %cst_32 : f32 to vector<16x32xf32>
    %81 = arith.mulf %78, %80 : vector<16x32xf32>
    %82 = math.log %81 : vector<16x32xf32>
    %83 = arith.mulf %78, %82 : vector<16x32xf32>
    %84 = vector.shape_cast %83 : vector<16x32xf32> to vector<1x16x32xf32>
    %cst_33 = arith.constant dense<0.000000e+00> : vector<1xf32>
    %85 = vector.multi_reduction <add>, %84, %cst_33 [1, 2] : vector<1x16x32xf32> to vector<1xf32>
    %86 = vector.shape_cast %85 : vector<1xf32> to vector<1x1x1xf32>
    %87 = vector.extract %86[0, 0, 0] : f32 from vector<1x1x1xf32>
    %88 = arith.addf %79, %87 : f32
    %c0_34 = arith.constant 0 : index
    %c2_35 = arith.constant 2 : index
    %89 = memref.load %arg4[%c0_34, %c2_35] : memref<3x3xf32, #tpu.memory_space<smem>>
    memref.store %88, %arg4[%c0_34, %c2_35] : memref<3x3xf32, #tpu.memory_space<smem>>
    %90 = arith.addf %33, %54 : vector<16x32xf32>
    %c1_36 = arith.constant 1 : index
    %c2_37 = arith.constant 2 : index
    %91 = memref.load %arg4[%c1_36, %c2_37] : memref<3x3xf32, #tpu.memory_space<smem>>
    %cst_38 = arith.constant 5.000000e-01 : f32
    %92 = vector.broadcast %cst_38 : f32 to vector<16x32xf32>
    %93 = arith.mulf %90, %92 : vector<16x32xf32>
    %94 = math.log %93 : vector<16x32xf32>
    %95 = arith.mulf %90, %94 : vector<16x32xf32>
    %96 = vector.shape_cast %95 : vector<16x32xf32> to vector<1x16x32xf32>
    %cst_39 = arith.constant dense<0.000000e+00> : vector<1xf32>
    %97 = vector.multi_reduction <add>, %96, %cst_39 [1, 2] : vector<1x16x32xf32> to vector<1xf32>
    %98 = vector.shape_cast %97 : vector<1xf32> to vector<1x1x1xf32>
    %99 = vector.extract %98[0, 0, 0] : f32 from vector<1x1x1xf32>
    %100 = arith.addf %91, %99 : f32
    %c1_40 = arith.constant 1 : index
    %c2_41 = arith.constant 2 : index
    %101 = memref.load %arg4[%c1_40, %c2_41] : memref<3x3xf32, #tpu.memory_space<smem>>
    memref.store %100, %arg4[%c1_40, %c2_41] : memref<3x3xf32, #tpu.memory_space<smem>>
    return
  }
  func.func @transform_0(%arg0: i32) -> (i32, i32) {
    %c0_i32 = arith.constant 0 : i32
    %c0_i32_0 = arith.constant 0 : i32
    return %arg0, %c0_i32 : i32, i32
  }
  func.func @transform_1(%arg0: i32) -> (i32, i32) {
    %c0_i32 = arith.constant 0 : i32
    %c0_i32_0 = arith.constant 0 : i32
    return %arg0, %c0_i32 : i32, i32
  }
  func.func @transform_2(%arg0: i32) -> (i32, i32) {
    %c0_i32 = arith.constant 0 : i32
    %c0_i32_0 = arith.constant 0 : i32
    return %arg0, %c0_i32 : i32, i32
  }
  func.func @transform_3(%arg0: i32) -> (i32, i32) {
    %c0_i32 = arith.constant 0 : i32
    %c0_i32_0 = arith.constant 0 : i32
    %c0_i32_1 = arith.constant 0 : i32
    return %c0_i32, %c0_i32_0 : i32, i32
  }
  func.func @transform_4(%arg0: i32) -> (i32, i32) {
    %c0_i32 = arith.constant 0 : i32
    %c0_i32_0 = arith.constant 0 : i32
    %c0_i32_1 = arith.constant 0 : i32
    return %c0_i32, %c0_i32_0 : i32, i32
  }
}

</mosaic_0001>

<llo_original>
// kernel: tpu_custom_call.1
$region0: #{tpu_custom_call.1}
  #allocation0 [shape = 'u32[]', space=smem, size = 0x4, offset = 0x4, fixed_abs, tag = 'smem constant byte address 0x4 - core index']
  #allocation1 [shape = 'u32[144,128]{1,0:T(1,128)}', space=vmem, size = 0x12000, scoped, tag = 'internal scratch']
  %s0 = inlined_call_operand.hbm [shape: f32[16,32], index: 0, kind: input, shape index: {}]
  %s1 = inlined_call_operand.hbm [shape: f32[16,32], index: 1, kind: input, shape index: {}]
  %s2 = inlined_call_operand.hbm [shape: f32[16,32], index: 2, kind: input, shape index: {}]
  %s3 = inlined_call_operand.hbm [shape: f32[3,3], index: 3, kind: output, shape index: {0}]
  %s4 = inlined_call_operand.vmem [shape: f32[3,1], index: 4, kind: output, shape index: {1}]
  %5 = xla_tuple %s3, %s4
  %s6 = sld [smem:[#allocation0]]
  $region46: #{tpu_custom_call.1} parent=0
    _
  %s8 = ssub.s32 1, %s6
  %s9 = scalar_select 0, %s8, %s6
  $region1: #{tpu_custom_call.1} parent=0
    #allocation2 [shape = 'u8[8192]{0}', space=vmem, size = 0x2000, scoped, tag = 'input window, operand 0, single buffered']
    #allocation3 [shape = 's32[1]{0}', space=sflag, size = 0x4, scoped, tag = 'scoped memory for tpu_custom_call.1']
    #allocation4 [shape = 's32[1]{0}', space=sflag, size = 0x4, scoped, tag = 'scoped memory for tpu_custom_call.1']
    #allocation5 [shape = 's32[1]{0}', space=sflag, size = 0x4, scoped, tag = 'scoped memory for tpu_custom_call.1']
    #allocation6 [shape = 'u8[8192]{0}', space=vmem, size = 0x2000, scoped, tag = 'input window, operand 1, single buffered']
    #allocation7 [shape = 's32[1]{0}', space=sflag, size = 0x4, scoped, tag = 'scoped memory for tpu_custom_call.1']
    #allocation8 [shape = 'u8[8192]{0}', space=vmem, size = 0x2000, scoped, tag = 'input window, operand 2, single buffered']
    #allocation9 [shape = 'u8[2048]{0}', space=smem, size = 0x800, scoped, tag = 'output window, operand 0, single buffered']
    #allocation10 [shape = 'u8[2048]{0}', space=smem, size = 0x800, scoped, tag = 'output window, operand 1, single buffered']
    %10 = vsyncpa [#allocation3], 0
    %11 = vsyncpa [#allocation7], 0
    %12 = vsyncpa [#allocation4], 0
    %13 = vsyncpa [#allocation5], 0
    // Predicated region
    $region2: #{tpu_custom_call.1} parent=1 // pred_check
      _
    $region3: #{tpu_custom_call.1} parent=1 // pred_check_branch
      %15 = sbr.rel (0) target = $region5
    $region4: #{tpu_custom_call.1} parent=1 // pred_region
      %s17 = ssub.s32 256, 256
      %18 = vsyncadd [#allocation3], %s17
      %s19 = sshll.u32 [#allocation2], 4
      %s20 = int_to_ptr.vmem [resolvable:$true] %s19
      %25 = dma.hbm_to_vmem [thread:$0]  %s0, 256, %s20, [#allocation3], 128, 128, 8
    $region5: #{tpu_custom_call.1} parent=1 // pred_fallthru
      _
    // Predicated region
    $region6: #{tpu_custom_call.1} parent=1 // pred_check
      _
    $region7: #{tpu_custom_call.1} parent=1 // pred_check_branch
      %27 = sbr.rel (0) target = $region9
    $region8: #{tpu_custom_call.1} parent=1 // pred_region
      %s29 = ssub.s32 256, 256
      %30 = vsyncadd [#allocation7], %s29
      %s31 = sshll.u32 [#allocation6], 4
      %s32 = int_to_ptr.vmem [resolvable:$true] %s31
      %37 = dma.hbm_to_vmem [thread:$0]  %s1, 256, %s32, [#allocation7], 128, 128, 8
    $region9: #{tpu_custom_call.1} parent=1 // pred_fallthru
      _
    // Predicated region
    $region10: #{tpu_custom_call.1} parent=1 // pred_check
      _
    $region11: #{tpu_custom_call.1} parent=1 // pred_check_branch
      %39 = sbr.rel (0) target = $region13
    $region12: #{tpu_custom_call.1} parent=1 // pred_region
      %s41 = ssub.s32 256, 256
      %42 = vsyncadd [#allocation7], %s41
      %s43 = sshll.u32 [#allocation8], 4
      %s44 = int_to_ptr.vmem [resolvable:$true] %s43
      %49 = dma.hbm_to_vmem [thread:$0]  %s2, 256, %s44, [#allocation7], 128, 128, 8
    $region13: #{tpu_custom_call.1} parent=1 // pred_fallthru
      _
    // Predicated region
    $region14: #{tpu_custom_call.1} parent=1 // pred_check
      _
    $region15: #{tpu_custom_call.1} parent=1 // pred_check_branch
      %51 = sbr.rel (0) target = $region17
    $region16: #{tpu_custom_call.1} parent=1 // pred_region
      %52 = dma.done [#allocation3], 256
    $region17: #{tpu_custom_call.1} parent=1 // pred_fallthru
      _
    // Predicated region
    $region18: #{tpu_custom_call.1} parent=1 // pred_check
      _
    $region19: #{tpu_custom_call.1} parent=1 // pred_check_branch
      %54 = sbr.rel (0) target = $region21
    $region20: #{tpu_custom_call.1} parent=1 // pred_region
      %55 = dma.done [#allocation7], 256
    $region21: #{tpu_custom_call.1} parent=1 // pred_fallthru
      _
    // Predicated region
    $region22: #{tpu_custom_call.1} parent=1 // pred_check
      _
    $region23: #{tpu_custom_call.1} parent=1 // pred_check_branch
      %57 = sbr.rel (0) target = $region25
    $region24: #{tpu_custom_call.1} parent=1 // pred_region
      %58 = dma.done [#allocation7], 256
    $region25: #{tpu_custom_call.1} parent=1 // pred_fallthru
      _
    %p59 = scmp.eq.s32.totalorder 0, 0
    // Predicated region
    $region26: #{tpu_custom_call.1} parent=1 // pred_check
      %p60 = pneg %p59
    $region27: #{tpu_custom_call.1} parent=1 // pred_check_branch
      %62 = sbr.rel (%p60) target = $region29
    $region28: #{tpu_custom_call.1} parent=1 // pred_region
      %s63 = scalar_lea.smem [#allocation10], 0
      %64 = sst [smem:[%s63]] 0.0
      %s65 = scalar_lea.smem [#allocation9], 0
      %66 = sst [smem:[%s65]] 0.0
      %s67 = scalar_lea.smem [#allocation9], 1
      %68 = sst [smem:[%s67]] 0.0
      %s69 = scalar_lea.smem [#allocation9], 2
      %70 = sst [smem:[%s69]] 0.0
      %s71 = scalar_lea.smem [#allocation10], 128
      %72 = sst [smem:[%s71]] 0.0
      %s73 = scalar_lea.smem [#allocation9], 128
      %74 = sst [smem:[%s73]] 0.0
      %s75 = scalar_lea.smem [#allocation9], 129
      %76 = sst [smem:[%s75]] 0.0
      %s77 = scalar_lea.smem [#allocation9], 130
      %78 = sst [smem:[%s77]] 0.0
      %s79 = scalar_lea.smem [#allocation10], 256
      %80 = sst [smem:[%s79]] 0.0
      %s81 = scalar_lea.smem [#allocation9], 256
      %82 = sst [smem:[%s81]] 0.0
      %s83 = scalar_lea.smem [#allocation9], 257
      %84 = sst [smem:[%s83]] 0.0
      %s85 = scalar_lea.smem [#allocation9], 258
      %86 = sst [smem:[%s85]] 0.0
    $region29: #{tpu_custom_call.1} parent=1 // pred_fallthru
      _
    %v87 = vld [vmem:[#allocation2] sm:$0xff]
    %v88 = vld [vmem:[#allocation2 + $0x8] sm:$0xff]
    %vm89 = vcmask 261120
    %v90 = vsel %vm89, %v87, -inf
    %91 = vmax.xlane.f32.xlu0 %v90
    %v92 = vpop.xlane.xlu0 %91
    %v93 = vsel %vm89, %v88, -inf
    %94 = vmax.xlane.f32.xlu0 %v93
    %v95 = vpop.xlane.xlu0 %94
    %v96 = vsub.f32 %v87, %v92
    %v97 = vsub.f32 %v88, %v95
    %v98 = vmul.f32 %v96, 1.442695
    %v99 = vpow.pop %v98
    %v100 = vmul.f32 %v97, 1.442695
    %v101 = vpow.pop %v100
    %v102 = vsel %vm89, %v99, 0.0
    %103 = vadd.xlane.f32.xlu0 %v102
    %v104 = vpop.xlane.xlu0 %103
    %v105 = vsel %vm89, %v101, 0.0
    %106 = vadd.xlane.f32.xlu0 %v105
    %v107 = vpop.xlane.xlu0 %106
    %v108 = vrcp.pop %v104
    %v109 = vmul.f32 %v99, %v108
    %v110 = vrcp.pop %v107
    %v111 = vmul.f32 %v101, %v110
    %v112 = vlog2.pop %v104
    %v113 = vmul.f32 %v112, 0.6931472
    %v114 = vlog2.pop %v107
    %v115 = vmul.f32 %v114, 0.6931472
    %v116 = vsub.f32 %v96, %v113
    %v117 = vsub.f32 %v97, %v115
    %s118 = sld [smem:[#allocation10]]
    %v119 = vmul.f32 %v109, %v116
    %v120 = vmul.f32 %v111, %v117
    %v121 = vsel %vm89, %v119, 0.0
    %v122 = vsel %vm89, %v120, 0.0
    %v123 = vadd.f32 %v121, %v122
    %124 = vadd.xlane.f32.xlu0 %v123
    %v125 = vpop.xlane.xlu0 %124
    %v126 = vrot.slane %v125, 4
    %v127 = vadd.f32 %v125, %v126
    %v128 = vrot.slane %v127, 2
    %v129 = vadd.f32 %v127, %v128
    %v130 = vrot.slane %v129, 1
    %v131 = vadd.f32 %v129, %v130
    %s132 = vtos %v131
    %s133 = sadd.f32 %s118, %s132
    %s134 = scalar_lea.smem [#allocation10], 0
    %135 = sst [smem:[%s134]] %s133
    %v136 = vld [vmem:[#allocation6] sm:$0xff]
    %v137 = vld [vmem:[#allocation6 + $0x8] sm:$0xff]
    %v138 = vsel %vm89, %v136, -inf
    %139 = vmax.xlane.f32.xlu0 %v138
    %v140 = vpop.xlane.xlu0 %139
    %v141 = vsel %vm89, %v137, -inf
    %142 = vmax.xlane.f32.xlu0 %v141
    %v143 = vpop.xlane.xlu0 %142
    %v144 = vsub.f32 %v136, %v140
    %v145 = vsub.f32 %v137, %v143
    %v146 = vmul.f32 %v144, 1.442695
    %v147 = vpow.pop %v146
    %v148 = vmul.f32 %v145, 1.442695
    %v149 = vpow.pop %v148
    %v150 = vsel %vm89, %v147, 0.0
    %151 = vadd.xlane.f32.xlu0 %v150
    %v152 = vpop.xlane.xlu0 %151
    %v153 = vsel %vm89, %v149, 0.0
    %154 = vadd.xlane.f32.xlu0 %v153
    %v155 = vpop.xlane.xlu0 %154
    %v156 = vrcp.pop %v152
    %v157 = vmul.f32 %v147, %v156
    %v158 = vrcp.pop %v155
    %v159 = vmul.f32 %v149, %v158
    %v160 = vlog2.pop %v152
    %v161 = vmul.f32 %v160, 0.6931472
    %v162 = vlog2.pop %v155
    %v163 = vmul.f32 %v162, 0.6931472
    %v164 = vsub.f32 %v144, %v161
    %v165 = vsub.f32 %v145, %v163
    %s166 = sld [smem:[#allocation10 + $0x80]]
    %v167 = vmul.f32 %v157, %v164
    %v168 = vmul.f32 %v159, %v165
    %v169 = vsel %vm89, %v167, 0.0
    %v170 = vsel %vm89, %v168, 0.0
    %v171 = vadd.f32 %v169, %v170
    %172 = vadd.xlane.f32.xlu0 %v171
    %v173 = vpop.xlane.xlu0 %172
    %v174 = vrot.slane %v173, 4
    %v175 = vadd.f32 %v173, %v174
    %v176 = vrot.slane %v175, 2
    %v177 = vadd.f32 %v175, %v176
    %v178 = vrot.slane %v177, 1
    %v179 = vadd.f32 %v177, %v178
    %s180 = vtos %v179
    %s181 = sadd.f32 %s166, %s180
    %s182 = scalar_lea.smem [#allocation10], 128
    %183 = sst [smem:[%s182]] %s181
    %v184 = vld [vmem:[#allocation8] sm:$0xff]
    %v185 = vld [vmem:[#allocation8 + $0x8] sm:$0xff]
    %v186 = vsel %vm89, %v184, -inf
    %187 = vmax.xlane.f32.xlu0 %v186
    %v188 = vpop.xlane.xlu0 %187
    %v189 = vsel %vm89, %v185, -inf
    %190 = vmax.xlane.f32.xlu0 %v189
    %v191 = vpop.xlane.xlu0 %190
    %v192 = vsub.f32 %v184, %v188
    %v193 = vsub.f32 %v185, %v191
    %v194 = vmul.f32 %v192, 1.442695
    %v195 = vpow.pop %v194
    %v196 = vmul.f32 %v193, 1.442695
    %v197 = vpow.pop %v196
    %v198 = vsel %vm89, %v195, 0.0
    %199 = vadd.xlane.f32.xlu0 %v198
    %v200 = vpop.xlane.xlu0 %199
    %v201 = vsel %vm89, %v197, 0.0
    %202 = vadd.xlane.f32.xlu0 %v201
    %v203 = vpop.xlane.xlu0 %202
    %v204 = vrcp.pop %v200
    %v205 = vmul.f32 %v195, %v204
    %v206 = vrcp.pop %v203
    %v207 = vmul.f32 %v197, %v206
    %v208 = vlog2.pop %v200
    %v209 = vmul.f32 %v208, 0.6931472
    %v210 = vlog2.pop %v203
    %v211 = vmul.f32 %v210, 0.6931472
    %v212 = vsub.f32 %v192, %v209
    %v213 = vsub.f32 %v193, %v211
    %s214 = sld [smem:[#allocation10 + $0x100]]
    %v215 = vmul.f32 %v205, %v212
    %v216 = vmul.f32 %v207, %v213
    %v217 = vsel %vm89, %v215, 0.0
    %v218 = vsel %vm89, %v216, 0.0
    %v219 = vadd.f32 %v217, %v218
    %220 = vadd.xlane.f32.xlu0 %v219
    %v221 = vpop.xlane.xlu0 %220
    %v222 = vrot.slane %v221, 4
    %v223 = vadd.f32 %v221, %v222
    %v224 = vrot.slane %v223, 2
    %v225 = vadd.f32 %v223, %v224
    %v226 = vrot.slane %v225, 1
    %v227 = vadd.f32 %v225, %v226
    %s228 = vtos %v227
    %s229 = sadd.f32 %s214, %s228
    %s230 = scalar_lea.smem [#allocation10], 256
    %231 = sst [smem:[%s230]] %s229
    %v232 = vadd.f32 %v109, %v157
    %v233 = vadd.f32 %v111, %v159
    %s234 = sld [smem:[#allocation9 + $0x1]]
    %v235 = vmul.f32 %v232, 0.5
    %v236 = vmul.f32 %v233, 0.5
    %v237 = vlog2.pop %v235
    %v238 = vmul.f32 %v237, 0.6931472
    %v239 = vlog2.pop %v236
    %v240 = vmul.f32 %v239, 0.6931472
    %v241 = vmul.f32 %v232, %v238
    %v242 = vmul.f32 %v233, %v240
    %v243 = vsel %vm89, %v241, 0.0
    %v244 = vsel %vm89, %v242, 0.0
    %v245 = vadd.f32 %v243, %v244
    %246 = vadd.xlane.f32.xlu0 %v245
    %v247 = vpop.xlane.xlu0 %246
    %v248 = vrot.slane %v247, 4
    %v249 = vadd.f32 %v247, %v248
    %v250 = vrot.slane %v249, 2
    %v251 = vadd.f32 %v249, %v250
    %v252 = vrot.slane %v251, 1
    %v253 = vadd.f32 %v251, %v252
    %s254 = vtos %v253
    %s255 = sadd.f32 %s234, %s254
    %s256 = scalar_lea.smem [#allocation9], 1
    %257 = sst [smem:[%s256]] %s255
    %v258 = vadd.f32 %v109, %v205
    %v259 = vadd.f32 %v111, %v207
    %s260 = sld [smem:[#allocation9 + $0x2]]
    %v261 = vmul.f32 %v258, 0.5
    %v262 = vmul.f32 %v259, 0.5
    %v263 = vlog2.pop %v261
    %v264 = vmul.f32 %v263, 0.6931472
    %v265 = vlog2.pop %v262
    %v266 = vmul.f32 %v265, 0.6931472
    %v267 = vmul.f32 %v258, %v264
    %v268 = vmul.f32 %v259, %v266
    %v269 = vsel %vm89, %v267, 0.0
    %v270 = vsel %vm89, %v268, 0.0
    %v271 = vadd.f32 %v269, %v270
    %272 = vadd.xlane.f32.xlu0 %v271
    %v273 = vpop.xlane.xlu0 %272
    %v274 = vrot.slane %v273, 4
    %v275 = vadd.f32 %v273, %v274
    %v276 = vrot.slane %v275, 2
    %v277 = vadd.f32 %v275, %v276
    %v278 = vrot.slane %v277, 1
    %v279 = vadd.f32 %v277, %v278
    %s280 = vtos %v279
    %s281 = sadd.f32 %s260, %s280
    %s282 = scalar_lea.smem [#allocation9], 2
    %283 = sst [smem:[%s282]] %s281
    %v284 = vadd.f32 %v157, %v205
    %v285 = vadd.f32 %v159, %v207
    %s286 = sld [smem:[#allocation9 + $0x82]]
    %v287 = vmul.f32 %v284, 0.5
    %v288 = vmul.f32 %v285, 0.5
    %v289 = vlog2.pop %v287
    %v290 = vmul.f32 %v289, 0.6931472
    %v291 = vlog2.pop %v288
    %v292 = vmul.f32 %v291, 0.6931472
    %v293 = vmul.f32 %v284, %v290
    %v294 = vmul.f32 %v285, %v292
    %v295 = vsel %vm89, %v293, 0.0
    %v296 = vsel %vm89, %v294, 0.0
    %v297 = vadd.f32 %v295, %v296
    %298 = vadd.xlane.f32.xlu0 %v297
    %v299 = vpop.xlane.xlu0 %298
    %v300 = vrot.slane %v299, 4
    %v301 = vadd.f32 %v299, %v300
    %v302 = vrot.slane %v301, 2
    %v303 = vadd.f32 %v301, %v302
    %v304 = vrot.slane %v303, 1
    %v305 = vadd.f32 %v303, %v304
    %s306 = vtos %v305
    %s307 = sadd.f32 %s286, %s306
    %s308 = scalar_lea.smem [#allocation9], 130
    %309 = sst [smem:[%s308]] %s307
    // Predicated region
    $region30: #{tpu_custom_call.1} parent=1 // pred_check
      _
    $region31: #{tpu_custom_call.1} parent=1 // pred_check_branch
      %311 = sbr.rel (0) target = $region33
    $region32: #{tpu_custom_call.1} parent=1 // pred_region
      %s313 = ssub.s32 64, 64
      %314 = vsyncadd [#allocation4], %s313
      %317 = dma.smem_to_hbm [#allocation9], 64, %s3, [#allocation4]
    $region33: #{tpu_custom_call.1} parent=1 // pred_fallthru
      _
    // Predicated region
    $region34: #{tpu_custom_call.1} parent=1 // pred_check
      _
    $region35: #{tpu_custom_call.1} parent=1 // pred_check_branch
      %319 = sbr.rel (0) target = $region37
    $region36: #{tpu_custom_call.1} parent=1 // pred_region
      %s321 = ssub.s32 64, 64
      %322 = vsyncadd [#allocation5], %s321
      %s324 = sshll.u32 %s4, 4
      %s325 = int_to_ptr.vmem [resolvable:$true] %s324
      %327 = dma.smem_to_vmem [#allocation10], 64, %s325, [#allocation5]
    $region37: #{tpu_custom_call.1} parent=1 // pred_fallthru
      _
    // Predicated region
    $region38: #{tpu_custom_call.1} parent=1 // pred_check
      _
    $region39: #{tpu_custom_call.1} parent=1 // pred_check_branch
      %329 = sbr.rel (0) target = $region41
    $region40: #{tpu_custom_call.1} parent=1 // pred_region
      %330 = dma.done [#allocation4], 64
    $region41: #{tpu_custom_call.1} parent=1 // pred_fallthru
      _
    // Predicated region
    $region42: #{tpu_custom_call.1} parent=1 // pred_check
      _
    $region43: #{tpu_custom_call.1} parent=1 // pred_check_branch
      %332 = sbr.rel (0) target = $region45
    $region44: #{tpu_custom_call.1} parent=1 // pred_region
      %333 = dma.done [#allocation5], 64
    $region45: #{tpu_custom_call.1} parent=1 // pred_fallthru
      _
    %334 = sfence
    %335 = vsyncpa [#allocation3], 1
    %336 = vsyncpa [#allocation7], 1
    %337 = vsyncpa [#allocation4], 1
    %338 = vsyncpa [#allocation5], 1

</llo_original>
